<compile_context>
chip_gen: v5e
topology: v5e:2x2
jax: 0.10.0
libtpu: 0.0.40
codegen_flags: <defaults>
</compile_context>

<pallas_src>
import functools

import jax
import jax.numpy as jnp
from jax.experimental import pallas as pl
from jax.experimental.pallas import tpu as pltpu


def _round_up(x, m):
    return (x + m - 1) // m * m


def _mrl_fused_kernel(x_ref, w_ref, b_ref, o_ref):
    # x_ref: [B_pad, D] f32, w_ref: [D, N_pad] bf16, b_ref: [1, N_pad] f32,
    # o_ref: [B_pad, N_pad] f32.
    x = x_ref[...].astype(w_ref.dtype)                      # bf16 for the MXU
    acc = jnp.dot(x, w_ref[...], preferred_element_type=jnp.float32)
    o_ref[...] = (acc + b_ref[...]).astype(o_ref.dtype)     # f32 bias add (VPU)


def init_mrl_params(key, num_classes, m, dtype=jnp.float32):
    """Deterministic nn.Linear-style init (uniform(-1/sqrt(in), 1/sqrt(in))).

    Returns dict doll -> (weight [num_classes, doll] PyTorch layout, bias [num_classes]).
    """
    params = {}
    for doll in m:
        key, kw, kb = jax.random.split(key, 3)
        bound = 1.0 / (doll ** 0.5)
        w = jax.random.uniform(kw, (num_classes, doll), dtype,
                               minval=-bound, maxval=bound)
        b = jax.random.uniform(kb, (num_classes,), dtype,
                               minval=-bound, maxval=bound)
        params[doll] = (w, b)
    return params


def pack_mrl_params(params, m, embed_dim, num_classes,
                    compute_dtype=jnp.bfloat16):
    """One-time packing of all MRL heads into a single zero-padded matrix.

    Rows >= doll_k of column block k are zero, so x_full @ W_packed reproduces
    x[:, :doll_k] @ W_k^T exactly for every head.  N is padded to a multiple of
    128 (lane-dense output).
    """
    C = num_classes
    N = len(m) * C
    N_pad = _round_up(max(N, 128), 128)
    W = jnp.zeros((embed_dim, N_pad), compute_dtype)
    b = jnp.zeros((1, N_pad), jnp.float32)
    for k, doll in enumerate(m):
        w_k, b_k = params[doll]                       # [C, doll], [C]
        W = W.at[:doll, k * C:(k + 1) * C].set(w_k.T.astype(compute_dtype))
        b = b.at[0, k * C:(k + 1) * C].set(b_k.astype(jnp.float32))
    return W, b


@functools.partial(jax.jit, static_argnames=("m", "num_classes"))
def _mrl_forward_packed(x, w_packed, b_packed, *, m, num_classes):
    B, D = x.shape
    B_pad = _round_up(max(B, 8), 8)                   # fill f32 sublane tile
    N_pad = w_packed.shape[1]
    x_pad = x if B == B_pad else jnp.pad(x, ((0, B_pad - B), (0, 0)))

    flops = 2 * B_pad * D * N_pad
    bytes_accessed = (B_pad * D * x.dtype.itemsize
                      + w_packed.size * w_packed.dtype.itemsize
                      + b_packed.size * b_packed.dtype.itemsize
                      + B_pad * N_pad * 4)

    out = pl.pallas_call(
        _mrl_fused_kernel,
        out_shape=jax.ShapeDtypeStruct((B_pad, N_pad), jnp.float32),
        in_specs=[
            pl.BlockSpec(memory_space=pltpu.VMEM),    # x_pad   [B_pad, D]
            pl.BlockSpec(memory_space=pltpu.VMEM),    # W_packed[D, N_pad]
            pl.BlockSpec(memory_space=pltpu.VMEM),    # b_packed[1, N_pad]
        ],
        out_specs=pl.BlockSpec(memory_space=pltpu.VMEM),
        cost_estimate=pl.CostEstimate(flops=flops, transcendentals=0,
                                      bytes_accessed=bytes_accessed),
    )(x_pad, w_packed, b_packed)

    C = num_classes
    # Slice padded rows/lanes back off (wrapper-side layout plumbing).
    return tuple(out[:B, k * C:(k + 1) * C] for k in range(len(m)))


def mrl_layer_forward(x, w_packed, b_packed, m, num_classes):
    """Matches MRLLayer.forward: list of [B, C] for list m, single [B, C] for int m."""
    if isinstance(m, int):
        (out,) = _mrl_forward_packed(x, w_packed, b_packed,
                                     m=(m,), num_classes=num_classes)
        return out
    return list(_mrl_forward_packed(x, w_packed, b_packed,
                                    m=tuple(m), num_classes=num_classes))


if __name__ == "__main__":
    m = [16, 64, 128, 256, 512, 768]
    num_classes = 10
    B = 2
    D = max(m)                      # embedding dim must cover the largest doll

    key = jax.random.PRNGKey(0)
    kx, kp = jax.random.split(key)
    x = jax.random.normal(kx, (B, D), jnp.float32)
    params = init_mrl_params(kp, num_classes, m)

    # One-time packing (replaces per-forward transposes / prefix slices).
    w_packed, b_packed = pack_mrl_params(params, m, D, num_classes)

    logits = mrl_layer_forward(x, w_packed, b_packed, m, num_classes)
    logits = [jax.block_until_ready(l) for l in logits]

    # Reference check against plain-JAX f32 linear layers.  Tolerances are
    # loosened because the kernel feeds the MXU bf16 inputs (f32 accumulate).
    ok = True
    for doll, l in zip(m, logits):
        w, b = params[doll]
        ref = x[:, :doll] @ w.T + b
        ok = ok and bool(jnp.allclose(l, ref, atol=5e-2, rtol=5e-2))
        assert l.shape == (B, num_classes)

    # Also exercise the int-valued `m` path (single head), as in MRLLayer.
    w1, b1 = pack_mrl_params(params, [64], D, num_classes)
    single = jax.block_until_ready(mrl_layer_forward(x, w1, b1, 64, num_classes))
    w64, b64 = params[64]
    ok = ok and bool(jnp.allclose(single, x[:, :64] @ w64.T + b64,
                                  atol=5e-2, rtol=5e-2))
    assert single.shape == (B, num_classes)

    if ok:
        print("KERNEL_OK")
</pallas_src>

<mosaic_0001>
module attributes {stable_mosaic.version = 11 : i64} {
  func.func @_mrl_fused_kernel(%arg0: memref<8x768xf32, #tpu.memory_space<vmem>>, %arg1: memref<768x128xbf16, #tpu.memory_space<vmem>>, %arg2: memref<1x128xf32, #tpu.memory_space<vmem>>, %arg3: memref<8x128xf32, #tpu.memory_space<vmem>>) attributes {dimension_semantics = [], scalar_prefetch = 0 : i64, scratch_operands = 0 : i64, tpu.core_type = #tpu.core_type<tc>} {
    %c0 = arith.constant 0 : index
    %c0_0 = arith.constant 0 : index
    %0 = vector.load %arg0[%c0, %c0_0] : memref<8x768xf32, #tpu.memory_space<vmem>>, vector<8x768xf32>
    %1 = arith.truncf %0 : vector<8x768xf32> to vector<8x768xbf16>
    %c0_1 = arith.constant 0 : index
    %c0_2 = arith.constant 0 : index
    %2 = vector.load %arg1[%c0_1, %c0_2] : memref<768x128xbf16, #tpu.memory_space<vmem>>, vector<768x128xbf16>
    %cst = arith.constant dense<0.000000e+00> : vector<8x128xf32>
    %3 = tpu.matmul %1, %2, %cst {dimension_numbers = #tpu.dot_dimension_numbers<[1], [0], [0], [1], [0, 0, 1, 1], [], []>} : vector<8x768xbf16>, vector<768x128xbf16>, vector<8x128xf32> -> vector<8x128xf32>
    %c0_3 = arith.constant 0 : index
    %c0_4 = arith.constant 0 : index
    %4 = vector.load %arg2[%c0_3, %c0_4] : memref<1x128xf32, #tpu.memory_space<vmem>>, vector<1x128xf32>
    %5 = vector.broadcast %4 : vector<1x128xf32> to vector<8x128xf32>
    %6 = arith.addf %3, %5 : vector<8x128xf32>
    %c0_5 = arith.constant 0 : index
    %c0_6 = arith.constant 0 : index
    %7 = vector.load %arg3[%c0_5, %c0_6] : memref<8x128xf32, #tpu.memory_space<vmem>>, vector<8x128xf32>
    tpu.vector_store %arg3[%c0_5, %c0_6], %6 {strides = array<i32>} : memref<8x128xf32, #tpu.memory_space<vmem>>, vector<8x128xf32>,
    return
  }
}

</mosaic_0001>

<llo_original>
// kernel: _mrl_forward_packed.1
$region0: #{_mrl_forward_packed.1}
  #allocation0 [shape = 'u32[]', space=smem, size = 0x4, offset = 0x4, fixed_abs, tag = 'smem constant byte address 0x4 - core index']
  #allocation1 [shape = 'u32[72,128]{1,0:T(1,128)}', space=vmem, size = 0x9000, scoped, tag = 'internal scratch']
  %s0 = inlined_call_operand.vmem [shape: f32[8,768], index: 0, kind: input, shape index: {}]
  %s1 = inlined_call_operand.hbm [shape: bf16[768,128], index: 1, kind: input, shape index: {}]
  %s2 = inlined_call_operand.vmem [shape: f32[1,128], index: 2, kind: input, shape index: {}]
  %s3 = inlined_call_operand.vmem [shape: f32[8,128], index: 3, kind: output, shape index: {}]
  %s4 = sld [smem:[#allocation0]]
  $region26: #{_mrl_forward_packed.1} parent=0
    _
  %s6 = ssub.s32 1, %s4
  %s7 = scalar_select 0, %s6, %s4
  $region1: #{_mrl_forward_packed.1} parent=0
    #allocation2 [shape = 'u8[196608]{0}', space=vmem, size = 0x30000, scoped, tag = 'input window, operand 1, single buffered']
    #allocation3 [shape = 's32[1]{0}', space=sflag, size = 0x4, scoped, tag = 'scoped memory for _mrl_forward_packed.1']
    %8 = vsyncpa [#allocation3], 0
    // Predicated region
    $region2: #{_mrl_forward_packed.1} parent=1 // pred_check
      _
    $region3: #{_mrl_forward_packed.1} parent=1 // pred_check_branch
      %10 = sbr.rel (0) target = $region5
    $region4: #{_mrl_forward_packed.1} parent=1 // pred_region
      _
    $region5: #{_mrl_forward_packed.1} parent=1 // pred_fallthru
      _
    // Predicated region
    $region6: #{_mrl_forward_packed.1} parent=1 // pred_check
      _
    $region7: #{_mrl_forward_packed.1} parent=1 // pred_check_branch
      %12 = sbr.rel (0) target = $region9
    $region8: #{_mrl_forward_packed.1} parent=1 // pred_region
      %14 = vsyncadd [#allocation3], 0
      %s15 = sshll.u32 %s1, 4
      %s16 = int_to_ptr.hbm [resolvable:$true] %s15
      %s17 = sshll.u32 [#allocation2], 4
      %s18 = int_to_ptr.vmem [resolvable:$true] %s17
      %23 = dma.hbm_to_vmem [thread:$0]  %s16, 6144, %s18, [#allocation3], 64, 64, 4
    $region9: #{_mrl_forward_packed.1} parent=1 // pred_fallthru
      _
    // Predicated region
    $region10: #{_mrl_forward_packed.1} parent=1 // pred_check
      _
    $region11: #{_mrl_forward_packed.1} parent=1 // pred_check_branch
      %25 = sbr.rel (0) target = $region13
    $region12: #{_mrl_forward_packed.1} parent=1 // pred_region
      _
    $region13: #{_mrl_forward_packed.1} parent=1 // pred_fallthru
      _
    // Predicated region
    $region14: #{_mrl_forward_packed.1} parent=1 // pred_check
      _
    $region15: #{_mrl_forward_packed.1} parent=1 // pred_check_branch
      %27 = sbr.rel (0) target = $region17
    $region16: #{_mrl_forward_packed.1} parent=1 // pred_region
      %29 = dma.done [#allocation3], 6144
    $region17: #{_mrl_forward_packed.1} parent=1 // pred_fallthru
      _
    %v30 = vld [vmem:[%s0] sm:$0xff]
    %v31 = vld [vmem:[%s0 + $0x8] sm:$0xff]
    %v32 = vld [vmem:[%s0 + $0x10] sm:$0xff]
    %v33 = vld [vmem:[%s0 + $0x18] sm:$0xff]
    %v34 = vld [vmem:[%s0 + $0x20] sm:$0xff]
    %v35 = vld [vmem:[%s0 + $0x28] sm:$0xff]
    %v36 = vpack.c.bf16 %v30, %v30
    %v37 = vpack.c.bf16 %v31, %v31
    %v38 = vpack.c.bf16 %v32, %v32
    %v39 = vpack.c.bf16 %v33, %v33
    %v40 = vpack.c.bf16 %v34, %v34
    %v41 = vpack.c.bf16 %v35, %v35
    %v42 = vld [vmem:[#allocation2] sm:$0xf]
    %v43 = vld [vmem:[#allocation2 + $0x4] sm:$0xf]
    %v44 = vld [vmem:[#allocation2 + $0x8] sm:$0xf]
    %v45 = vld [vmem:[#allocation2 + $0xc] sm:$0xf]
    %v46 = vld [vmem:[#allocation2 + $0x10] sm:$0xf]
    %v47 = vld [vmem:[#allocation2 + $0x14] sm:$0xf]
    %v48 = vld [vmem:[#allocation2 + $0x18] sm:$0xf]
    %v49 = vld [vmem:[#allocation2 + $0x1c] sm:$0xf]
    %v50 = vld [vmem:[#allocation2 + $0x20] sm:$0xf]
    %v51 = vld [vmem:[#allocation2 + $0x24] sm:$0xf]
    %v52 = vld [vmem:[#allocation2 + $0x28] sm:$0xf]
    %v53 = vld [vmem:[#allocation2 + $0x2c] sm:$0xf]
    %v54 = vld [vmem:[#allocation2 + $0x30] sm:$0xf]
    %v55 = vld [vmem:[#allocation2 + $0x34] sm:$0xf]
    %v56 = vld [vmem:[#allocation2 + $0x38] sm:$0xf]
    %v57 = vld [vmem:[#allocation2 + $0x3c] sm:$0xf]
    %v58 = vld [vmem:[#allocation2 + $0x40] sm:$0xf]
    %v59 = vld [vmem:[#allocation2 + $0x44] sm:$0xf]
    %v60 = vld [vmem:[#allocation2 + $0x48] sm:$0xf]
    %v61 = vld [vmem:[#allocation2 + $0x4c] sm:$0xf]
    %v62 = vld [vmem:[#allocation2 + $0x50] sm:$0xf]
    %v63 = vld [vmem:[#allocation2 + $0x54] sm:$0xf]
    %v64 = vld [vmem:[#allocation2 + $0x58] sm:$0xf]
    %v65 = vld [vmem:[#allocation2 + $0x5c] sm:$0xf]
    %v66 = vld [vmem:[#allocation2 + $0x60] sm:$0xf]
    %v67 = vld [vmem:[#allocation2 + $0x64] sm:$0xf]
    %v68 = vld [vmem:[#allocation2 + $0x68] sm:$0xf]
    %v69 = vld [vmem:[#allocation2 + $0x6c] sm:$0xf]
    %v70 = vld [vmem:[#allocation2 + $0x70] sm:$0xf]
    %v71 = vld [vmem:[#allocation2 + $0x74] sm:$0xf]
    %v72 = vld [vmem:[#allocation2 + $0x78] sm:$0xf]
    %v73 = vld [vmem:[#allocation2 + $0x7c] sm:$0xf]
    %v74 = vld [vmem:[#allocation2 + $0x80] sm:$0xf]
    %v75 = vld [vmem:[#allocation2 + $0x84] sm:$0xf]
    %v76 = vld [vmem:[#allocation2 + $0x88] sm:$0xf]
    %v77 = vld [vmem:[#allocation2 + $0x8c] sm:$0xf]
    %v78 = vld [vmem:[#allocation2 + $0x90] sm:$0xf]
    %v79 = vld [vmem:[#allocation2 + $0x94] sm:$0xf]
    %v80 = vld [vmem:[#allocation2 + $0x98] sm:$0xf]
    %v81 = vld [vmem:[#allocation2 + $0x9c] sm:$0xf]
    %v82 = vld [vmem:[#allocation2 + $0xa0] sm:$0xf]
    %v83 = vld [vmem:[#allocation2 + $0xa4] sm:$0xf]
    %v84 = vld [vmem:[#allocation2 + $0xa8] sm:$0xf]
    %v85 = vld [vmem:[#allocation2 + $0xac] sm:$0xf]
    %v86 = vld [vmem:[#allocation2 + $0xb0] sm:$0xf]
    %v87 = vld [vmem:[#allocation2 + $0xb4] sm:$0xf]
    %v88 = vld [vmem:[#allocation2 + $0xb8] sm:$0xf]
    %v89 = vld [vmem:[#allocation2 + $0xbc] sm:$0xf]
    %v90 = vld [vmem:[#allocation2 + $0xc0] sm:$0xf]
    %v91 = vld [vmem:[#allocation2 + $0xc4] sm:$0xf]
    %v92 = vld [vmem:[#allocation2 + $0xc8] sm:$0xf]
    %v93 = vld [vmem:[#allocation2 + $0xcc] sm:$0xf]
    %v94 = vld [vmem:[#allocation2 + $0xd0] sm:$0xf]
    %v95 = vld [vmem:[#allocation2 + $0xd4] sm:$0xf]
    %v96 = vld [vmem:[#allocation2 + $0xd8] sm:$0xf]
    %v97 = vld [vmem:[#allocation2 + $0xdc] sm:$0xf]
    %v98 = vld [vmem:[#allocation2 + $0xe0] sm:$0xf]
    %v99 = vld [vmem:[#allocation2 + $0xe4] sm:$0xf]
    %v100 = vld [vmem:[#allocation2 + $0xe8] sm:$0xf]
    %v101 = vld [vmem:[#allocation2 + $0xec] sm:$0xf]
    %v102 = vld [vmem:[#allocation2 + $0xf0] sm:$0xf]
    %v103 = vld [vmem:[#allocation2 + $0xf4] sm:$0xf]
    %v104 = vld [vmem:[#allocation2 + $0xf8] sm:$0xf]
    %v105 = vld [vmem:[#allocation2 + $0xfc] sm:$0xf]
    %v106 = vld [vmem:[#allocation2 + $0x100] sm:$0xf]
    %v107 = vld [vmem:[#allocation2 + $0x104] sm:$0xf]
    %v108 = vld [vmem:[#allocation2 + $0x108] sm:$0xf]
    %v109 = vld [vmem:[#allocation2 + $0x10c] sm:$0xf]
    %v110 = vld [vmem:[#allocation2 + $0x110] sm:$0xf]
    %v111 = vld [vmem:[#allocation2 + $0x114] sm:$0xf]
    %v112 = vld [vmem:[#allocation2 + $0x118] sm:$0xf]
    %v113 = vld [vmem:[#allocation2 + $0x11c] sm:$0xf]
    %v114 = vld [vmem:[#allocation2 + $0x120] sm:$0xf]
    %v115 = vld [vmem:[#allocation2 + $0x124] sm:$0xf]
    %v116 = vld [vmem:[#allocation2 + $0x128] sm:$0xf]
    %v117 = vld [vmem:[#allocation2 + $0x12c] sm:$0xf]
    %v118 = vld [vmem:[#allocation2 + $0x130] sm:$0xf]
    %v119 = vld [vmem:[#allocation2 + $0x134] sm:$0xf]
    %v120 = vld [vmem:[#allocation2 + $0x138] sm:$0xf]
    %v121 = vld [vmem:[#allocation2 + $0x13c] sm:$0xf]
    %v122 = vld [vmem:[#allocation2 + $0x140] sm:$0xf]
    %v123 = vld [vmem:[#allocation2 + $0x144] sm:$0xf]
    %v124 = vld [vmem:[#allocation2 + $0x148] sm:$0xf]
    %v125 = vld [vmem:[#allocation2 + $0x14c] sm:$0xf]
    %v126 = vld [vmem:[#allocation2 + $0x150] sm:$0xf]
    %v127 = vld [vmem:[#allocation2 + $0x154] sm:$0xf]
    %v128 = vld [vmem:[#allocation2 + $0x158] sm:$0xf]
    %v129 = vld [vmem:[#allocation2 + $0x15c] sm:$0xf]
    %v130 = vld [vmem:[#allocation2 + $0x160] sm:$0xf]
    %v131 = vld [vmem:[#allocation2 + $0x164] sm:$0xf]
    %v132 = vld [vmem:[#allocation2 + $0x168] sm:$0xf]
    %v133 = vld [vmem:[#allocation2 + $0x16c] sm:$0xf]
    %v134 = vld [vmem:[#allocation2 + $0x170] sm:$0xf]
    %v135 = vld [vmem:[#allocation2 + $0x174] sm:$0xf]
    %v136 = vld [vmem:[#allocation2 + $0x178] sm:$0xf]
    %v137 = vld [vmem:[#allocation2 + $0x17c] sm:$0xf]
    %v138 = vld [vmem:[%s2] sm:$0x1]
    %v140 = vperm.slane %v138, 0
    %v238 = vunpack.c.l.b16 %v42
    %v239 = vunpack.c.l.b16 %v43
    %v240 = vunpack.c.l.b16 %v44
    %v241 = vunpack.c.l.b16 %v45
    %v242 = vunpack.c.l.b16 %v46
    %v243 = vunpack.c.l.b16 %v47
    %v244 = vunpack.c.l.b16 %v48
    %v245 = vunpack.c.l.b16 %v49
    %v246 = vunpack.c.l.b16 %v50
    %v247 = vunpack.c.l.b16 %v51
    %v248 = vunpack.c.l.b16 %v52
    %v249 = vunpack.c.l.b16 %v53
    %v250 = vunpack.c.l.b16 %v54
    %v251 = vunpack.c.l.b16 %v55
    %v252 = vunpack.c.l.b16 %v56
    %v253 = vunpack.c.l.b16 %v57
    %v254 = vunpack.c.l.b16 %v58
    %v255 = vunpack.c.l.b16 %v59
    %v256 = vunpack.c.l.b16 %v60
    %v257 = vunpack.c.l.b16 %v61
    %v258 = vunpack.c.l.b16 %v62
    %v259 = vunpack.c.l.b16 %v63
    %v260 = vunpack.c.l.b16 %v64
    %v261 = vunpack.c.l.b16 %v65
    %v262 = vunpack.c.l.b16 %v66
    %v263 = vunpack.c.l.b16 %v67
    %v264 = vunpack.c.l.b16 %v68
    %v265 = vunpack.c.l.b16 %v69
    %v266 = vunpack.c.l.b16 %v70
    %v267 = vunpack.c.l.b16 %v71
    %v268 = vunpack.c.l.b16 %v72
    %v269 = vunpack.c.l.b16 %v73
    %v270 = vunpack.c.l.b16 %v74
    %v271 = vunpack.c.l.b16 %v75
    %v272 = vunpack.c.l.b16 %v76
    %v273 = vunpack.c.l.b16 %v77
    %v274 = vunpack.c.l.b16 %v78
    %v275 = vunpack.c.l.b16 %v79
    %v276 = vunpack.c.l.b16 %v80
    %v277 = vunpack.c.l.b16 %v81
    %v278 = vunpack.c.l.b16 %v82
    %v279 = vunpack.c.l.b16 %v83
    %v280 = vunpack.c.l.b16 %v84
    %v281 = vunpack.c.l.b16 %v85
    %v282 = vunpack.c.l.b16 %v86
    %v283 = vunpack.c.l.b16 %v87
    %v284 = vunpack.c.l.b16 %v88
    %v285 = vunpack.c.l.b16 %v89
    %v286 = vunpack.c.l.b16 %v90
    %v287 = vunpack.c.l.b16 %v91
    %v288 = vunpack.c.l.b16 %v92
    %v289 = vunpack.c.l.b16 %v93
    %v290 = vunpack.c.l.b16 %v94
    %v291 = vunpack.c.l.b16 %v95
    %v292 = vunpack.c.l.b16 %v96
    %v293 = vunpack.c.l.b16 %v97
    %v294 = vunpack.c.l.b16 %v98
    %v295 = vunpack.c.l.b16 %v99
    %v296 = vunpack.c.l.b16 %v100
    %v297 = vunpack.c.l.b16 %v101
    %v298 = vunpack.c.l.b16 %v102
    %v299 = vunpack.c.l.b16 %v103
    %v300 = vunpack.c.l.b16 %v104
    %v301 = vunpack.c.l.b16 %v105
    %v302 = vunpack.c.l.b16 %v106
    %v303 = vunpack.c.l.b16 %v107
    %v304 = vunpack.c.l.b16 %v108
    %v305 = vunpack.c.l.b16 %v109
    %v306 = vunpack.c.l.b16 %v110
    %v307 = vunpack.c.l.b16 %v111
    %v308 = vunpack.c.l.b16 %v112
    %v309 = vunpack.c.l.b16 %v113
    %v310 = vunpack.c.l.b16 %v114
    %v311 = vunpack.c.l.b16 %v115
    %v312 = vunpack.c.l.b16 %v116
    %v313 = vunpack.c.l.b16 %v117
    %v314 = vunpack.c.l.b16 %v118
    %v315 = vunpack.c.l.b16 %v119
    %v316 = vunpack.c.l.b16 %v120
    %v317 = vunpack.c.l.b16 %v121
    %v318 = vunpack.c.l.b16 %v122
    %v319 = vunpack.c.l.b16 %v123
    %v320 = vunpack.c.l.b16 %v124
    %v321 = vunpack.c.l.b16 %v125
    %v322 = vunpack.c.l.b16 %v126
    %v323 = vunpack.c.l.b16 %v127
    %v324 = vunpack.c.l.b16 %v128
    %v325 = vunpack.c.l.b16 %v129
    %v326 = vunpack.c.l.b16 %v130
    %v327 = vunpack.c.l.b16 %v131
    %v328 = vunpack.c.l.b16 %v132
    %v329 = vunpack.c.l.b16 %v133
    %v330 = vunpack.c.l.b16 %v134
    %v331 = vunpack.c.l.b16 %v135
    %v332 = vunpack.c.l.b16 %v136
    %v333 = vunpack.c.l.b16 %v137
    %v334 = vpack.c.b16 %v239, %v238
    %v335 = vpack.c.b16 %v241, %v240
    %v336 = vpack.c.b16 %v243, %v242
    %v337 = vpack.c.b16 %v245, %v244
    %v338 = vpack.c.b16 %v247, %v246
    %v339 = vpack.c.b16 %v249, %v248
    %v340 = vpack.c.b16 %v251, %v250
    %v341 = vpack.c.b16 %v253, %v252
    %v342 = vpack.c.b16 %v255, %v254
    %v343 = vpack.c.b16 %v257, %v256
    %v344 = vpack.c.b16 %v259, %v258
    %v345 = vpack.c.b16 %v261, %v260
    %v346 = vpack.c.b16 %v263, %v262
    %v347 = vpack.c.b16 %v265, %v264
    %v348 = vpack.c.b16 %v267, %v266
    %v349 = vpack.c.b16 %v269, %v268
    %v350 = vpack.c.b16 %v271, %v270
    %v351 = vpack.c.b16 %v273, %v272
    %v352 = vpack.c.b16 %v275, %v274
    %v353 = vpack.c.b16 %v277, %v276
    %v354 = vpack.c.b16 %v279, %v278
    %v355 = vpack.c.b16 %v281, %v280
    %v356 = vpack.c.b16 %v283, %v282
    %v357 = vpack.c.b16 %v285, %v284
    %v358 = vpack.c.b16 %v287, %v286
    %v359 = vpack.c.b16 %v289, %v288
    %v360 = vpack.c.b16 %v291, %v290
    %v361 = vpack.c.b16 %v293, %v292
    %v362 = vpack.c.b16 %v295, %v294
    %v363 = vpack.c.b16 %v297, %v296
    %v364 = vpack.c.b16 %v299, %v298
    %v365 = vpack.c.b16 %v301, %v300
    %v366 = vpack.c.b16 %v303, %v302
    %v367 = vpack.c.b16 %v305, %v304
    %v368 = vpack.c.b16 %v307, %v306
    %v369 = vpack.c.b16 %v309, %v308
    %v370 = vpack.c.b16 %v311, %v310
    %v371 = vpack.c.b16 %v313, %v312
    %v372 = vpack.c.b16 %v315, %v314
    %v373 = vpack.c.b16 %v317, %v316
    %v374 = vpack.c.b16 %v319, %v318
    %v375 = vpack.c.b16 %v321, %v320
    %v376 = vpack.c.b16 %v323, %v322
    %v377 = vpack.c.b16 %v325, %v324
    %v378 = vpack.c.b16 %v327, %v326
    %v379 = vpack.c.b16 %v329, %v328
    %v380 = vpack.c.b16 %v331, %v330
    %v381 = vpack.c.b16 %v333, %v332
    %430 = vmatpush.bf16.msra.mxu0 %v341
    %431 = vmatpush.bf16.msra.mxu0 %v340
    %432 = vmatpush.bf16.msra.mxu0 %v339
    %433 = vmatpush.bf16.msra.mxu0 %v338
    %434 = vmatpush.bf16.msra.mxu0 %v337
    %435 = vmatpush.bf16.msra.mxu0 %v336
    %436 = vmatpush.bf16.msra.mxu0 %v335
    %437 = vmatpush.bf16.msra.mxu0 %v334
    %438 = vmatmul.bf16.gmra.mxu0 %v36
    %v439 = vpop.f32.mrf.mxu0
    %v440 = vadd.f32 %v140, %v439
    %v441 = vpop.f32.mrf.mxu0
    %442 = vdwg.mxu0
    %443 = vmatpush.bf16.msra.mxu0 %v349
    %444 = vmatpush.bf16.msra.mxu0 %v348
    %445 = vmatpush.bf16.msra.mxu0 %v347
    %446 = vmatpush.bf16.msra.mxu0 %v346
    %447 = vmatpush.bf16.msra.mxu0 %v345
    %448 = vmatpush.bf16.msra.mxu0 %v344
    %449 = vmatpush.bf16.msra.mxu0 %v343
    %450 = vmatpush.bf16.msra.mxu0 %v342
    %451 = vmatmul.bf16.gmra.mxu0 %v37
    %v452 = vpop.f32.mrf.mxu0
    %v453 = vadd.f32 %v440, %v452
    %v454 = vpop.f32.mrf.mxu0
    %455 = vdwg.mxu0
    %456 = vmatpush.bf16.msra.mxu0 %v357
    %457 = vmatpush.bf16.msra.mxu0 %v356
    %458 = vmatpush.bf16.msra.mxu0 %v355
    %459 = vmatpush.bf16.msra.mxu0 %v354
    %460 = vmatpush.bf16.msra.mxu0 %v353
    %461 = vmatpush.bf16.msra.mxu0 %v352
    %462 = vmatpush.bf16.msra.mxu0 %v351
    %463 = vmatpush.bf16.msra.mxu0 %v350
    %464 = vmatmul.bf16.gmra.mxu0 %v38
    %v465 = vpop.f32.mrf.mxu0
    %v466 = vadd.f32 %v453, %v465
    %v467 = vpop.f32.mrf.mxu0
    %468 = vdwg.mxu0
    %469 = vmatpush.bf16.msra.mxu0 %v365
    %470 = vmatpush.bf16.msra.mxu0 %v364
    %471 = vmatpush.bf16.msra.mxu0 %v363
    %472 = vmatpush.bf16.msra.mxu0 %v362
    %473 = vmatpush.bf16.msra.mxu0 %v361
    %474 = vmatpush.bf16.msra.mxu0 %v360
    %475 = vmatpush.bf16.msra.mxu0 %v359
    %476 = vmatpush.bf16.msra.mxu0 %v358
    %477 = vmatmul.bf16.gmra.mxu0 %v39
    %v478 = vpop.f32.mrf.mxu0
    %v479 = vadd.f32 %v466, %v478
    %v480 = vpop.f32.mrf.mxu0
    %481 = vdwg.mxu0
    %482 = vmatpush.bf16.msra.mxu0 %v373
    %483 = vmatpush.bf16.msra.mxu0 %v372
    %484 = vmatpush.bf16.msra.mxu0 %v371
    %485 = vmatpush.bf16.msra.mxu0 %v370
    %486 = vmatpush.bf16.msra.mxu0 %v369
    %487 = vmatpush.bf16.msra.mxu0 %v368
    %488 = vmatpush.bf16.msra.mxu0 %v367
    %489 = vmatpush.bf16.msra.mxu0 %v366
    %490 = vmatmul.bf16.gmra.mxu0 %v40
    %v491 = vpop.f32.mrf.mxu0
    %v492 = vadd.f32 %v479, %v491
    %v493 = vpop.f32.mrf.mxu0
    %494 = vdwg.mxu0
    %495 = vmatpush.bf16.msra.mxu0 %v381
    %496 = vmatpush.bf16.msra.mxu0 %v380
    %497 = vmatpush.bf16.msra.mxu0 %v379
    %498 = vmatpush.bf16.msra.mxu0 %v378
    %499 = vmatpush.bf16.msra.mxu0 %v377
    %500 = vmatpush.bf16.msra.mxu0 %v376
    %501 = vmatpush.bf16.msra.mxu0 %v375
    %502 = vmatpush.bf16.msra.mxu0 %v374
    %503 = vmatmul.bf16.gmra.mxu0 %v41
    %v504 = vpop.f32.mrf.mxu0
    %v505 = vadd.f32 %v492, %v504
    %v506 = vpop.f32.mrf.mxu0
    %507 = vdwg.mxu0
    %508 = vst [vmem:[%s3] sm:$0xff] %v505
    // Predicated region
    $region18: #{_mrl_forward_packed.1} parent=1 // pred_check
      _
    $region19: #{_mrl_forward_packed.1} parent=1 // pred_check_branch
      %510 = sbr.rel (0) target = $region21
    $region20: #{_mrl_forward_packed.1} parent=1 // pred_region
      _
    $region21: #{_mrl_forward_packed.1} parent=1 // pred_fallthru
      _
    // Predicated region
    $region22: #{_mrl_forward_packed.1} parent=1 // pred_check
      _
    $region23: #{_mrl_forward_packed.1} parent=1 // pred_check_branch
      %512 = sbr.rel (0) target = $region25
    $region24: #{_mrl_forward_packed.1} parent=1 // pred_region
      _
    $region25: #{_mrl_forward_packed.1} parent=1 // pred_fallthru
      _
    %513 = vsyncpa [#allocation3], 1

</llo_original>
